<compile_context>
chip_gen: v7x
topology: tpu7x:2x2x1
jax: 0.10.0
libtpu: 0.0.40
codegen_flags: <defaults>
</compile_context>

<pallas_src>
from functools import partial

import numpy as np
import jax
import jax.numpy as jnp
from jax import lax
from jax.experimental import pallas as pl
from jax.experimental.pallas import tpu as pltpu

K = 5
STRIDE = 2
PAD = K // 2        # 2
OUT_PAD = 1
C_MID = 8           # hidden channels of the two transposed convs

# 1-D polyphase taps of ConvTranspose(k=5, stride=2, pad=2, output_padding=1),
# written with the ORIGINAL (un-flipped) transposed-conv weight index t:
#     out[2j + 0] = w[4]*x[j-1] + w[2]*x[j] + w[0]*x[j+1]
#     out[2j + 1] = w[3]*x[j]   + w[1]*x[j+1]
# entries: (input offset d, weight index t)
_L1_TAPS = (((-1, 4), (0, 2), (1, 0)),      # output parity 0
            ((0, 3), (1, 1)))               # output parity 1

# Layer 2 consumes y1 kept as its 2x2 parity planes P_p,q on the HxW grid
# (y1[2a+p, 2b+q] == P_{p,q}[a, b]).  Output row 4a+ru of the 4x upscale is a
# short combination of those planes.  entries: (source parity, offset, t)
_L2_TAPS = (((1, -1, 4), (0, 0, 2), (1, 0, 0)),     # ru = 0
            ((0, 0, 3), (1, 0, 1)),                 # ru = 1
            ((0, 0, 4), (1, 0, 2), (0, 1, 0)),      # ru = 2
            ((1, 0, 3), (0, 1, 1)))                 # ru = 3

# All distinct (parity, offset) source patterns appearing in _L2_TAPS.
_ROWP = ((1, -1), (0, 0), (1, 0), (0, 1))
_COLP = ((1, -1), (0, 0), (1, 0), (0, 1))


def _find_tap(taps, parity, delta):
    for (p_, d_, t_) in taps:
        if p_ == parity and d_ == delta:
            return t_
    return None


# --------------------- pltpu.roll sign-convention probe ---------------------

def _roll_probe_kernel(x_ref, o_ref):
    o_ref[...] = pltpu.roll(x_ref[...], shift=1, axis=1)


_ROLL_LIKE_JNP = None


def _roll_like_jnp():
    """True  -> pltpu.roll(x, s)[l] == x[(l - s) % n]  (jnp.roll convention)
       False -> pltpu.roll(x, s)[l] == x[(l + s) % n]."""
    global _ROLL_LIKE_JNP
    if _ROLL_LIKE_JNP is None:
        x = jnp.broadcast_to(jnp.arange(128, dtype=jnp.float32)[None, :], (8, 128))
        y = pl.pallas_call(
            _roll_probe_kernel,
            out_shape=jax.ShapeDtypeStruct((8, 128), jnp.float32))(x)
        v = float(np.asarray(y)[0, 0])
        if v == 127.0:
            _ROLL_LIKE_JNP = True
        elif v == 1.0:
            _ROLL_LIKE_JNP = False
        else:
            raise RuntimeError(f"unexpected pltpu.roll semantics (probe={v})")
    return _ROLL_LIKE_JNP


# ------------------------------ fused kernel ------------------------------

def _make_kernel(h, w, roll_like_jnp):
    lanes = C_MID * w      # 8 * W lanes (multiple of 128)

    def rot(x, s0):
        # returns r with r[a, l] = x[a, (l + s0) % lanes]
        s0 = s0 % lanes
        if s0 == 0:
            return x
        shift = (lanes - s0) if roll_like_jnp else s0
        return pltpu.roll(x, shift=shift, axis=1)

    def kernel(xsh_ref, w1_ref, b1_ref, w2_ref, beff_ref, o_ref, y1_ref):
        # xsh_ref : (1, 3, H+2, 8W) VMEM  column-pre-shifted (dx=-1,0,1), lane-
        #           tiled copies of the zero-padded input (value independent of
        #           the channel lane block).
        # w1_ref  : (K*K, 8W)       VMEM  ConvT1 weights, lane co*W+b -> w1[co,ty,tx]
        # b1_ref  : (1, 8W)         VMEM  ConvT1 bias,    lane co*W+b -> b1[co]
        # w2_ref  : (2, 4, 4, 8, 8W) VMEM layer-2 per-phase lane weight vectors
        # beff_ref: (1,)            SMEM  folded bias  b3 + sum_co w3[co]*b2[co]
        # o_ref   : (1, 2, H, 8W)   VMEM  o[0, rp, a, (rl*4+rv)*W+b] = y[4a+2rp+rl, 4b+rv]
        # y1_ref  : (2, 2, H+2, 8W) VMEM  scratch: y1_ref[p,q,a+1,ci*W+b] =
        #           sigmoid(ConvT1(x))[ci, 2a+p, 2b+q]; rows 0 and H+1 are zero halos.
        zplane = jnp.zeros((h, lanes), jnp.float32)
        zero_row = jnp.zeros((1, lanes), jnp.float32)

        # ---- layer 1: ConvT(1->8) + sigmoid, channel lane-packed ----
        for p in range(2):
            for q in range(2):
                acc = zplane
                for (dy, ty) in _L1_TAPS[p]:
                    for (dx, tx) in _L1_TAPS[q]:
                        t = ty * K + tx
                        acc = acc + (w1_ref[t:t + 1, :]
                                     * xsh_ref[0, dx + 1, dy + 1:dy + 1 + h, :])
                acc = acc + b1_ref[0:1, :]
                # zero the 1-row halos every step (cheap, megacore-safe), then
                # write the interior.  sigmoid(x) = 0.5*(tanh(x/2)+1)  (EUP)
                y1_ref[p, q, 0:1, :] = zero_row
                y1_ref[p, q, h + 1:h + 2, :] = zero_row
                y1_ref[p, q, 1:h + 1, :] = 0.5 * (jnp.tanh(0.5 * acc) + 1.0)

        # ---- layer 2: ConvT(8->8) folded with Conv2d(8->1, 1x1), phase-packed ----
        # Two (H, 8W) accumulators, one per output row-parity slab rp.  Channel
        # mixing is done with lane rotations by k*W (+ column shift db); the
        # column-boundary zeros are already folded into the weight vectors.
        beff = beff_ref[0]
        accs = [zplane, zplane]
        for ri, (pr, da) in enumerate(_ROWP):
            used = [any(_find_tap(_L2_TAPS[2 * rp + rl], pr, da) is not None
                        for rl in range(2)) for rp in range(2)]
            if not (used[0] or used[1]):
                continue
            for pc in range(2):
                src = y1_ref[pr, pc, da + 1:da + 1 + h, :]       # (H, 8W)
                for cj, (pc2, db) in enumerate(_COLP):
                    if pc2 != pc:
                        continue
                    for k in range(C_MID):
                        r = rot(src, k * w + db)
                        for rp in range(2):
                            if used[rp]:
                                accs[rp] = accs[rp] + w2_ref[rp, ri, cj, k:k + 1, :] * r

        for rp in range(2):
            o_ref[0, rp, :, :] = accs[rp] + beff                 # full-width store

    return kernel


# ------------------------------ wrapper ------------------------------

def _fold_conv2_and_proj(w2_t, b2, w3, b3):
    """Fold the (linear) 1x1 Conv2d(8->1) into the ConvT2d(8->8) weights."""
    w3_vec = w3.reshape(-1)                              # (8,)
    w_eff = jnp.einsum('o,iokl->ikl', w3_vec, w2_t)      # (8, 5, 5) [cin, ky, kx]
    b_eff = (b3.reshape(-1)[0] + jnp.dot(w3_vec, b2)).reshape(1)
    return w_eff, b_eff


def _build_layer2_lanes(w2eff, w):
    """Per-phase lane weight vectors for layer 2, shape (2, 4, 4, 8, 8*w).

    Entry [rp, ri, cj, k, ph*w + b] multiplies the source plane Y_{pr,pc}
    row-shifted by da and lane-rotated by k*w + db, and equals
    w2eff[(ph+k)%8, ti, tj] when output phase (ru=2rp+ph//4, rv=ph%4) uses row
    pattern ri=(pr,da) and col pattern cj=(pc,db) and column b+db is in range,
    else 0 (so wrapped/out-of-range lanes contribute exactly 0)."""
    nph = C_MID
    shape = (2, 4, 4, C_MID, nph)
    ci_idx = np.zeros(shape, np.int32)
    ti_idx = np.zeros(shape, np.int32)
    tj_idx = np.zeros(shape, np.int32)
    sel = np.zeros(shape, np.float32)
    for rp in range(2):
        for ri, (pr, da) in enumerate(_ROWP):
            for cj, (pc, db) in enumerate(_COLP):
                for k in range(C_MID):
                    for ph in range(nph):
                        rl, rv = ph // 4, ph % 4
                        ru = 2 * rp + rl
                        ti = _find_tap(_L2_TAPS[ru], pr, da)
                        tj = _find_tap(_L2_TAPS[rv], pc, db)
                        if ti is None or tj is None:
                            continue
                        ci_idx[rp, ri, cj, k, ph] = (ph + k) % C_MID
                        ti_idx[rp, ri, cj, k, ph] = ti
                        tj_idx[rp, ri, cj, k, ph] = tj
                        sel[rp, ri, cj, k, ph] = 1.0
    bmask = np.ones((4, w), np.float32)
    for cj, (_pc, db) in enumerate(_COLP):
        if db == -1:
            bmask[cj, 0] = 0.0
        elif db == 1:
            bmask[cj, w - 1] = 0.0
    vals = w2eff[ci_idx, ti_idx, tj_idx] * sel                       # (2,4,4,8,8)
    w2lane = vals[..., None] * bmask[None, None, :, None, None, :]   # (2,4,4,8,8,w)
    return w2lane.reshape(2, 4, 4, C_MID, nph * w)


def upscaler_heat_pallas(x, params):
    return _upscaler_heat_impl(x, params, _roll_like_jnp())


@partial(jax.jit, static_argnums=(2,))
def _upscaler_heat_impl(x, params, roll_like_jnp):
    n, cin, h, w = x.shape
    assert cin == 1
    assert w % 16 == 0 and w >= 16, "lane packing requires W to be a multiple of 16"
    lanes = C_MID * w
    hp = h + 2

    # lane-tiled, column-pre-shifted input planes: (n, 3, H+2, 8W)  (layout only)
    xp = jnp.pad(x, ((0, 0), (0, 0), (1, 1), (1, 1)))                  # (n,1,H+2,W+2)
    xsh = jnp.stack([xp[:, 0, :, d:d + w] for d in range(3)], axis=1)  # (n,3,H+2,W)
    xsh = jnp.tile(xsh, (1, 1, 1, C_MID))                              # (n,3,H+2,8W)

    # layer-1 weights / bias, lane-replicated
    w1rep = jnp.repeat(params["w1_t"].reshape(C_MID, K * K).T, w, axis=1)  # (25, 8W)
    b1rep = jnp.repeat(params["b1"], w).reshape(1, lanes)                  # (1, 8W)

    # layer-2 weights (ConvT2 folded with the 1x1 conv), per-phase lane vectors
    w2eff, b_eff = _fold_conv2_and_proj(params["w2_t"], params["b2"],
                                        params["w3"], params["b3"])
    w2lane = _build_layer2_lanes(w2eff, w)                                 # (2,4,4,8,8W)

    kernel = _make_kernel(h, w, roll_like_jnp)

    out_ph = pl.pallas_call(
        kernel,
        out_shape=jax.ShapeDtypeStruct((n, 2, h, lanes), jnp.float32),
        grid=(n,),
        in_specs=[
            pl.BlockSpec((1, 3, hp, lanes), lambda i: (i, 0, 0, 0)),
            pl.BlockSpec((K * K, lanes), lambda i: (0, 0)),
            pl.BlockSpec((1, lanes), lambda i: (0, 0)),
            pl.BlockSpec((2, 4, 4, C_MID, lanes), lambda i: (0, 0, 0, 0, 0)),
            pl.BlockSpec(memory_space=pltpu.MemorySpace.SMEM),
        ],
        out_specs=pl.BlockSpec((1, 2, h, lanes), lambda i: (i, 0, 0, 0)),
        scratch_shapes=[pltpu.VMEM((2, 2, hp, lanes), jnp.float32)],
        compiler_params=pltpu.CompilerParams(
            dimension_semantics=("parallel",)),
    )(xsh, w1rep, b1rep, w2lane, b_eff)

    # Un-interleave the 16 polyphase planes (pure layout plumbing):
    #   out_ph[n, rp, a, (rl*4+rv)*W + b] == y[n, 4a+2rp+rl, 4b+rv]
    o6 = out_ph.reshape(n, 2, h, 2, 4, w)          # (n, rp, a, rl, rv, b)
    y = o6.transpose(0, 2, 1, 3, 5, 4)             # (n, a, rp, rl, b, rv)
    return y.reshape(n, 1, 4 * h, 4 * w)


# ------------------------------ reference & params ------------------------------

def _convt_weight_as_conv(w_t):
    """PyTorch ConvTranspose2d weight (Cin, Cout, K, K) -> equivalent Conv2d
    weight (Cout, Cin, K, K): spatially flipped + channel-transposed."""
    return jnp.transpose(jnp.flip(w_t, axis=(2, 3)), (1, 0, 2, 3))


def init_params(key):
    ks = jax.random.split(key, 6)
    return dict(
        w1_t=0.2 * jax.random.normal(ks[0], (1, 8, K, K), jnp.float32),  # ConvT2d(1,8)
        b1=0.1 * jax.random.normal(ks[1], (8,), jnp.float32),
        w2_t=0.2 * jax.random.normal(ks[2], (8, 8, K, K), jnp.float32),  # ConvT2d(8,8)
        b2=0.1 * jax.random.normal(ks[3], (8,), jnp.float32),
        w3=0.2 * jax.random.normal(ks[4], (1, 8, 1, 1), jnp.float32),    # Conv2d(8,1,1)
        b3=0.1 * jax.random.normal(ks[5], (1,), jnp.float32),
    )


@jax.jit
def upscaler_heat_ref(x, params):
    dn = ("NCHW", "OIHW", "NCHW")
    pad = ((K - 1 - PAD, K - 1 - PAD + OUT_PAD),) * 2
    w1c = _convt_weight_as_conv(params["w1_t"])
    w2c = _convt_weight_as_conv(params["w2_t"])
    y = lax.conv_general_dilated(x, w1c, (1, 1), pad, lhs_dilation=(STRIDE, STRIDE),
                                 dimension_numbers=dn) + params["b1"].reshape(1, -1, 1, 1)
    y = jax.nn.sigmoid(y)
    y = lax.conv_general_dilated(y, w2c, (1, 1), pad, lhs_dilation=(STRIDE, STRIDE),
                                 dimension_numbers=dn) + params["b2"].reshape(1, -1, 1, 1)
    y = lax.conv_general_dilated(y, params["w3"], (1, 1), "VALID",
                                 dimension_numbers=dn) + params["b3"].reshape(1, -1, 1, 1)
    return y


if __name__ == "__main__":
    key = jax.random.PRNGKey(0)
    kx, kp = jax.random.split(key)
    x = jax.random.normal(kx, (2, 1, 16, 16), jnp.float32)   # (N, C, H, W), NCHW
    params = init_params(kp)

    out = jax.block_until_ready(upscaler_heat_pallas(x, params))
    ref = jax.block_until_ready(upscaler_heat_ref(x, params))

    assert out.shape == (2, 1, 64, 64), out.shape
    np.testing.assert_allclose(np.asarray(out), np.asarray(ref), rtol=5e-4, atol=5e-4)
    print("KERNEL_OK")
</pallas_src>

<mosaic_0001>
module attributes {stable_mosaic.version = 11 : i64} {
  func.func @_roll_probe_kernel(%arg0: memref<8x128xf32, #tpu.memory_space<vmem>>, %arg1: memref<8x128xf32, #tpu.memory_space<vmem>>) attributes {dimension_semantics = [], scalar_prefetch = 0 : i64, scratch_operands = 0 : i64, tpu.core_type = #tpu.core_type<tc>} {
    %c0 = arith.constant 0 : index
    %c0_0 = arith.constant 0 : index
    %0 = vector.load %arg0[%c0, %c0_0] : memref<8x128xf32, #tpu.memory_space<vmem>>, vector<8x128xf32>
    %c1_i32 = arith.constant 1 : i32
    %1 = tpu.dynamic_rotate %0 by %c1_i32 dim 1 : vector<8x128xf32>, i32 -> vector<8x128xf32>
    %c0_1 = arith.constant 0 : index
    %c0_2 = arith.constant 0 : index
    %2 = vector.load %arg1[%c0_1, %c0_2] : memref<8x128xf32, #tpu.memory_space<vmem>>, vector<8x128xf32>
    tpu.vector_store %arg1[%c0_1, %c0_2], %1 {strides = array<i32>} : memref<8x128xf32, #tpu.memory_space<vmem>>, vector<8x128xf32>,
    return
  }
}

</mosaic_0001>

<llo_original>
// kernel: tpu_custom_call.1
$region0: #{tpu_custom_call.1}
  #allocation0 [shape = 'u32[]', space=smem, size = 0x4, offset = 0x4, fixed_abs, tag = 'smem constant byte address 0x4 - core index']
  #allocation1 [shape = 'u32[144,128]{1,0:T(1,128)}', space=vmem, size = 0x12000, scoped, tag = 'internal scratch']
  %s0 = inlined_call_operand.hbm [shape: f32[8,128], index: 0, kind: input, shape index: {}]
  %s1 = inlined_call_operand.hbm [shape: f32[8,128], index: 1, kind: output, shape index: {}]
  %s2 = sld [smem:[#allocation0]]
  $region18: #{tpu_custom_call.1} parent=0
    _
  %s4 = ssub.s32 1, %s2
  %s5 = scalar_select 0, %s4, %s2
  $region1: #{tpu_custom_call.1} parent=0
    #allocation2 [shape = 'u8[4096]{0}', space=vmem, size = 0x1000, scoped, tag = 'input window, operand 0, single buffered']
    #allocation3 [shape = 's32[1]{0}', space=sflag, size = 0x4, scoped, tag = 'scoped memory for tpu_custom_call.1']
    #allocation4 [shape = 's32[1]{0}', space=sflag, size = 0x4, scoped, tag = 'scoped memory for tpu_custom_call.1']
    #allocation5 [shape = 'u8[4096]{0}', space=vmem, size = 0x1000, scoped, tag = 'output window, operand 0, single buffered']
    %6 = vsyncpa [#allocation3], 0
    %7 = vsyncpa [#allocation4], 0
    // Predicated region
    $region2: #{tpu_custom_call.1} parent=1 // pred_check
      _
    $region3: #{tpu_custom_call.1} parent=1 // pred_check_branch
      %9 = sbr.rel (0) target = $region5
    $region4: #{tpu_custom_call.1} parent=1 // pred_region
      %s11 = ssub.s32 128, 128
      %12 = vsyncadd [#allocation3], %s11
      %s14 = sshll.u32 [#allocation2], 4
      %s15 = int_to_ptr.vmem [resolvable:$true] %s14
      %17 = dma.hbm_to_vmem [thread:$0]  %s0, 128, %s15, [#allocation3]
    $region5: #{tpu_custom_call.1} parent=1 // pred_fallthru
      _
    // Predicated region
    $region6: #{tpu_custom_call.1} parent=1 // pred_check
      _
    $region7: #{tpu_custom_call.1} parent=1 // pred_check_branch
      %19 = sbr.rel (0) target = $region9
    $region8: #{tpu_custom_call.1} parent=1 // pred_region
      %20 = dma.done [#allocation3], 128
    $region9: #{tpu_custom_call.1} parent=1 // pred_fallthru
      _
    %v21 = vld [vmem:[#allocation2] sm:$0xff]
    %22 = vrot.lane.b32.xlu0 %v21, 1
    %v23 = vpop.permute.xlu0 %22
    %24 = vst [vmem:[#allocation5] sm:$0xff] %v23
    // Predicated region
    $region10: #{tpu_custom_call.1} parent=1 // pred_check
      _
    $region11: #{tpu_custom_call.1} parent=1 // pred_check_branch
      %26 = sbr.rel (0) target = $region13
    $region12: #{tpu_custom_call.1} parent=1 // pred_region
      %s28 = ssub.s32 128, 128
      %29 = vsyncadd [#allocation4], %s28
      %s31 = sshll.u32 [#allocation5], 4
      %s32 = int_to_ptr.vmem [resolvable:$true] %s31
      %34 = dma.vmem_to_hbm [thread:$0]  %s32, 128, %s1, [#allocation4]
    $region13: #{tpu_custom_call.1} parent=1 // pred_fallthru
      _
    // Predicated region
    $region14: #{tpu_custom_call.1} parent=1 // pred_check
      _
    $region15: #{tpu_custom_call.1} parent=1 // pred_check_branch
      %36 = sbr.rel (0) target = $region17
    $region16: #{tpu_custom_call.1} parent=1 // pred_region
      %37 = dma.done [#allocation4], 128
    $region17: #{tpu_custom_call.1} parent=1 // pred_fallthru
      _
    %38 = vsyncpa [#allocation3], 1
    %39 = vsyncpa [#allocation4], 1

</llo_original>
